<compile_context>
chip_gen: v7x
topology: tpu7x:2x2x1
jax: 0.10.0
libtpu: 0.0.40
codegen_flags: <defaults>
</compile_context>

<pallas_src>
import functools

import jax
import jax.numpy as jnp
from jax import lax
from jax.experimental import pallas as pl
from jax.experimental.pallas import tpu as pltpu


def _focal_loss_kernel(logits_ref, side_ref, out_ref, *, gamma, n, tn):
    """One batch tile: partial sum of focal losses over this tile's valid rows."""
    x = logits_ref[...].astype(jnp.float32)                 # (TN, C) upcast in-kernel
    side = side_ref[...]                                    # (TN, 2) int32 packed stream
    t = side[:, 0:1]                                        # (TN, 1) int32 targets
    a_t = pltpu.bitcast(side[:, 1:2], jnp.float32)          # (TN, 1) f32 alpha[target]

    # log-sum-exp along class axis (numerically stable); no full log_softmax matrix.
    m = jnp.max(x, axis=-1, keepdims=True)
    lse = m + jnp.log(jnp.sum(jnp.exp(x - m), axis=-1, keepdims=True))

    # target logit via one-hot compare; (1, C) iota broadcasts against (TN, 1) targets.
    class_ids = lax.broadcasted_iota(jnp.int32, (1, x.shape[-1]), 1)     # (1, C)
    x_t = jnp.sum(jnp.where(class_ids == t, x, 0.0), axis=-1, keepdims=True)
    logp_t = x_t - lse                                                   # (TN, 1)

    # weighted cross-entropy with reduction='none' (torch semantics), then focal modulation.
    ce = -a_t * logp_t                                                   # (TN, 1)
    p_t = jnp.exp(-ce)
    one_minus = 1.0 - p_t
    if float(gamma) == int(gamma):
        mod = lax.integer_pow(one_minus, int(gamma))                     # plain multiplies
    else:
        mod = one_minus ** jnp.float32(gamma)
    focal = mod * ce                                                     # (TN, 1)

    # mask rows past the true batch size (last tile may contain padded/garbage rows);
    # keep this as a where-select (NOT an arithmetic mask) so NaN/Inf cannot propagate.
    row = pl.program_id(0) * tn + lax.broadcasted_iota(jnp.int32, (tn, 1), 0)
    focal = jnp.where(row < n, focal, 0.0)

    # per-block partial sum, stored as a dense lane-full (1, 1, 128) block (unmasked vst).
    out_ref[...] = jnp.full(out_ref.shape, jnp.sum(focal), dtype=out_ref.dtype)


def _tpu_vmem_plan():
    """(logits_tile_target_bytes, total_vmem_budget_bytes, vmem_limit_bytes) per generation."""
    kind = ""
    try:
        kind = jax.devices()[0].device_kind.lower()
    except Exception:
        pass
    if "v5" in kind:
        # 128 MiB VMEM, ~820 GB/s HBM: ~4 MiB tiles already amortize step overhead.
        return 4 * 1024 * 1024, 56 * 1024 * 1024, 64 * 1024 * 1024
    if "v6" in kind:
        # 128 MiB VMEM, ~1.4 TB/s HBM: go toward 8 MiB tiles.
        return 8 * 1024 * 1024, 56 * 1024 * 1024, 64 * 1024 * 1024
    # v7x (or unknown -> assume most constrained): 64 MiB VMEM/TC, highest per-TC HBM BW.
    return 8 * 1024 * 1024, 40 * 1024 * 1024, 48 * 1024 * 1024


def focal_loss(logits, targets, alpha, gamma=2, tile_rows=None):
    """logits: (N, C) float (any dtype), targets: (N,) int, alpha: (C,) float."""
    n, c = logits.shape
    itemsize = logits.dtype.itemsize

    targets_i32 = targets.reshape(n).astype(jnp.int32)
    # per-sample class weight gathered outside the kernel (tiny XLA gather), then packed
    # with the targets into a single lane-dense (N, 2) int32 stream (alpha bits via bitcast).
    alpha_t = alpha.astype(jnp.float32)[targets_i32]                      # (N,)
    side = jnp.stack(
        [targets_i32, lax.bitcast_convert_type(alpha_t, jnp.int32)], axis=-1)  # (N, 2) i32

    tile_target, vmem_budget, vmem_limit = _tpu_vmem_plan()
    if tile_rows is None:
        # Per-row VMEM cost: 2x double-buffered native-dtype logits row
        # + ~4 live (TN, C) f32 temps (upcast, x-m, exp, one-hot select)
        # + the lane-padded (TN, 2) side-input row, double-buffered.
        bytes_per_row = c * (2 * itemsize + 4 * 4) + 2 * 128 * 4
        tile_rows = min(tile_target // max(c * itemsize, 1),
                        vmem_budget // max(bytes_per_row, 1))
    tn = max(8, (int(tile_rows) // 8) * 8)   # sublane multiple, no fixed row cap
    tn = min(tn, ((n + 7) // 8) * 8)         # don't exceed (rounded-up) batch
    num_blocks = pl.cdiv(n, tn)
    # TODO(synk): for vocab-scale C (where even an 8-row tile + f32 temps exceeds the v7x
    # 64 MiB/TC budget), add a class-axis grid with an online-LSE ("arbitrary") accumulator.

    kernel = functools.partial(_focal_loss_kernel, gamma=gamma, n=n, tn=tn)

    partials = pl.pallas_call(
        kernel,
        out_shape=jax.ShapeDtypeStruct((num_blocks, 1, 128), jnp.float32),
        grid=(num_blocks,),
        in_specs=[
            pl.BlockSpec((tn, c), lambda i: (i, 0)),   # logits tile (native dtype)
            pl.BlockSpec((tn, 2), lambda i: (i, 0)),   # packed [target, bitcast(alpha_t)]
        ],
        out_specs=pl.BlockSpec((1, 1, 128), lambda i: (i, 0, 0)),
        compiler_params=pltpu.CompilerParams(
            dimension_semantics=("parallel",),          # shards across TCs on v7x
            vmem_limit_bytes=vmem_limit,
        ),
    )(logits, side)

    # tiny final reduction (per-block partial sums -> unweighted mean) in plain JAX
    return jnp.sum(partials[:, 0, 0]) / jnp.float32(n)


if __name__ == "__main__":
    key = jax.random.PRNGKey(0)
    k1, k2 = jax.random.split(key)

    N, C = 29, 32          # non-multiple-of-8 batch exercises tail masking
    gamma = 2
    logits = jax.random.normal(k1, (N, C), dtype=jnp.float32)
    targets = jax.random.randint(k2, (N,), 0, C, dtype=jnp.int32)
    alpha = jnp.linspace(0.5, 1.5, C, dtype=jnp.float32)

    def ref_loss(lg, tg, al, g):
        logp = jax.nn.log_softmax(lg.astype(jnp.float32), axis=-1)
        logp_t = jnp.take_along_axis(logp, tg[:, None], axis=-1)[:, 0]
        ce = -al[tg] * logp_t
        p_t = jnp.exp(-ce)
        return jnp.mean((1.0 - p_t) ** g * ce)

    # multi-block grid (tile_rows=8 -> 4 blocks, last one partial) and auto tiling
    loss_tiled = focal_loss(logits, targets, alpha, gamma=gamma, tile_rows=8)
    loss_auto = focal_loss(logits, targets, alpha, gamma=gamma)
    jax.block_until_ready((loss_tiled, loss_auto))

    ref = ref_loss(logits, targets, alpha, gamma)
    assert jnp.allclose(loss_tiled, ref, rtol=1e-5, atol=1e-5), (loss_tiled, ref)
    assert jnp.allclose(loss_auto, ref, rtol=1e-5, atol=1e-5), (loss_auto, ref)

    # bf16 logits streamed natively over HBM, upcast inside the kernel
    logits_bf16 = logits.astype(jnp.bfloat16)
    loss_bf16 = focal_loss(logits_bf16, targets, alpha, gamma=gamma)
    jax.block_until_ready(loss_bf16)
    ref_bf16 = ref_loss(logits_bf16, targets, alpha, gamma)
    assert jnp.allclose(loss_bf16, ref_bf16, rtol=5e-2, atol=5e-2), (loss_bf16, ref_bf16)

    print("KERNEL_OK")
</pallas_src>

<mosaic_0001>
module attributes {stable_mosaic.version = 11 : i64} {
  func.func @_focal_loss_kernel(%arg0: i32, %arg1: memref<8x32xf32, #tpu.memory_space<vmem>>, %arg2: memref<8x2xi32, #tpu.memory_space<vmem>>, %arg3: memref<1x1x128xf32, #tpu.memory_space<vmem>>) attributes {dimension_semantics = [#tpu.dimension_semantics<parallel>], iteration_bounds = array<i64: 4>, scalar_prefetch = 0 : i64, scratch_operands = 0 : i64, tpu.core_type = #tpu.core_type<tc>, window_params = [{transform_indices = @transform_0, window_bounds = array<i64: 8, 32>}, {transform_indices = @transform_1, window_bounds = array<i64: 8, 2>}, {transform_indices = @transform_2, window_bounds = array<i64: 1, 1, 128>}]} {
    %c0 = arith.constant 0 : index
    %c0_0 = arith.constant 0 : index
    %0 = vector.load %arg1[%c0, %c0_0] : memref<8x32xf32, #tpu.memory_space<vmem>>, vector<8x32xf32>
    %c0_1 = arith.constant 0 : index
    %c0_2 = arith.constant 0 : index
    %1 = vector.load %arg2[%c0_1, %c0_2] : memref<8x2xi32, #tpu.memory_space<vmem>>, vector<8x2xi32>
    %2 = vector.extract_strided_slice %1 {offsets = [0, 0], sizes = [8, 1], strides = [1, 1]} : vector<8x2xi32> to vector<8x1xi32>
    %3 = vector.extract_strided_slice %1 {offsets = [0, 1], sizes = [8, 1], strides = [1, 1]} : vector<8x2xi32> to vector<8x1xi32>
    %4 = tpu.bitcast %3 : vector<8x1xi32> -> vector<8x1xf32>
    %cst = arith.constant dense<0xFF800000> : vector<8xf32>
    %5 = vector.multi_reduction <maximumf>, %0, %cst [1] : vector<8x32xf32> to vector<8xf32>
    %6 = vector.shape_cast %5 : vector<8xf32> to vector<8x1xf32>
    %7 = vector.broadcast %6 : vector<8x1xf32> to vector<8x32xf32>
    %8 = arith.subf %0, %7 : vector<8x32xf32>
    %9 = math.exp %8 : vector<8x32xf32>
    %cst_3 = arith.constant dense<0.000000e+00> : vector<8xf32>
    %10 = vector.multi_reduction <add>, %9, %cst_3 [1] : vector<8x32xf32> to vector<8xf32>
    %11 = vector.shape_cast %10 : vector<8xf32> to vector<8x1xf32>
    %12 = math.log %11 : vector<8x1xf32>
    %13 = arith.addf %6, %12 : vector<8x1xf32>
    %14 = tpu.iota {dimensions = array<i32: 1>} : vector<1x32xi32>
    %15 = vector.broadcast %14 : vector<1x32xi32> to vector<8x32xi32>
    %16 = vector.broadcast %2 : vector<8x1xi32> to vector<8x32xi32>
    %17 = arith.cmpi eq, %15, %16 : vector<8x32xi32>
    %cst_4 = arith.constant 0.000000e+00 : f32
    %18 = vector.broadcast %cst_4 : f32 to vector<8x32xf32>
    %19 = arith.select %17, %0, %18 : vector<8x32xi1>, vector<8x32xf32>
    %cst_5 = arith.constant dense<0.000000e+00> : vector<8xf32>
    %20 = vector.multi_reduction <add>, %19, %cst_5 [1] : vector<8x32xf32> to vector<8xf32>
    %21 = vector.shape_cast %20 : vector<8xf32> to vector<8x1xf32>
    %22 = arith.subf %21, %13 : vector<8x1xf32>
    %cst_6 = arith.constant 0.000000e+00 : f32
    %23 = vector.broadcast %cst_6 : f32 to vector<8x1xf32>
    %24 = arith.subf %23, %4 : vector<8x1xf32>
    %25 = arith.mulf %24, %22 : vector<8x1xf32>
    %cst_7 = arith.constant 0.000000e+00 : f32
    %26 = vector.broadcast %cst_7 : f32 to vector<8x1xf32>
    %27 = arith.subf %26, %25 : vector<8x1xf32>
    %28 = math.exp %27 : vector<8x1xf32>
    %cst_8 = arith.constant 1.000000e+00 : f32
    %29 = vector.broadcast %cst_8 : f32 to vector<8x1xf32>
    %30 = arith.subf %29, %28 : vector<8x1xf32>
    %31 = arith.mulf %30, %30 : vector<8x1xf32>
    %32 = arith.mulf %31, %25 : vector<8x1xf32>
    %c8_i32 = arith.constant 8 : i32
    %33 = arith.muli %arg0, %c8_i32 : i32
    %34 = tpu.iota {dimensions = array<i32: 0>} : vector<8x1xi32>
    %35 = vector.broadcast %33 : i32 to vector<8x1xi32>
    %36 = arith.addi %35, %34 : vector<8x1xi32>
    %c29_i32 = arith.constant 29 : i32
    %37 = vector.broadcast %c29_i32 : i32 to vector<8x1xi32>
    %38 = arith.cmpi slt, %36, %37 : vector<8x1xi32>
    %cst_9 = arith.constant 0.000000e+00 : f32
    %39 = vector.broadcast %cst_9 : f32 to vector<8x1xf32>
    %40 = arith.select %38, %32, %39 : vector<8x1xi1>, vector<8x1xf32>
    %41 = vector.shape_cast %40 : vector<8x1xf32> to vector<1x8x1xf32>
    %cst_10 = arith.constant dense<0.000000e+00> : vector<1xf32>
    %42 = vector.multi_reduction <add>, %41, %cst_10 [1, 2] : vector<1x8x1xf32> to vector<1xf32>
    %43 = vector.shape_cast %42 : vector<1xf32> to vector<1x1x1xf32>
    %44 = vector.extract %43[0, 0, 0] : f32 from vector<1x1x1xf32>
    %45 = vector.broadcast %44 : f32 to vector<1x1x128xf32>
    %c0_11 = arith.constant 0 : index
    %c0_12 = arith.constant 0 : index
    %c0_13 = arith.constant 0 : index
    %46 = vector.load %arg3[%c0_11, %c0_12, %c0_13] : memref<1x1x128xf32, #tpu.memory_space<vmem>>, vector<1x1x128xf32>
    tpu.vector_store %arg3[%c0_11, %c0_12, %c0_13], %45 {strides = array<i32>} : memref<1x1x128xf32, #tpu.memory_space<vmem>>, vector<1x1x128xf32>,
    return
  }
  func.func @transform_0(%arg0: i32) -> (i32, i32) {
    %c0_i32 = arith.constant 0 : i32
    %c0_i32_0 = arith.constant 0 : i32
    return %arg0, %c0_i32 : i32, i32
  }
  func.func @transform_1(%arg0: i32) -> (i32, i32) {
    %c0_i32 = arith.constant 0 : i32
    %c0_i32_0 = arith.constant 0 : i32
    return %arg0, %c0_i32 : i32, i32
  }
  func.func @transform_2(%arg0: i32) -> (i32, i32, i32) {
    %c0_i32 = arith.constant 0 : i32
    %c0_i32_0 = arith.constant 0 : i32
    %c0_i32_1 = arith.constant 0 : i32
    return %arg0, %c0_i32, %c0_i32_0 : i32, i32, i32
  }
}

</mosaic_0001>

<llo_original>
// kernel: tpu_custom_call.1
$region0: #{tpu_custom_call.1}
  #allocation0 [shape = 'u32[]', space=smem, size = 0x4, offset = 0x4, fixed_abs, tag = 'smem constant byte address 0x4 - core index']
  #allocation1 [shape = 'u32[144,128]{1,0:T(1,128)}', space=vmem, size = 0x12000, scoped, tag = 'internal scratch']
  %s0 = inlined_call_operand.vmem [shape: f32[29,32], index: 0, kind: input, shape index: {}]
  %s1 = inlined_call_operand.vmem [shape: s32[29,2], index: 1, kind: input, shape index: {}]
  %s2 = inlined_call_operand.hbm [shape: f32[4,1,128], index: 2, kind: output, shape index: {}]
  %s3 = sld [smem:[#allocation0]]
  $region41: #{tpu_custom_call.1} parent=0
    _
  %s5 = ssub.s32 1, %s3
  %s6 = scalar_select 0, %s5, %s3
  $region1: #{tpu_custom_call.1} parent=0
    #allocation2 [shape = 'u8[1024]{0}', space=vmem, size = 0x400, scoped, tag = 'output window, operand 0']
    #allocation3 [shape = 's32[2]{0}', space=sflag, size = 0x8, scoped, tag = 'scoped memory for tpu_custom_call.1']
    %7 = vsyncpa [#allocation3], 0
    %s8 = scalar_lea.sflag [#allocation3], 1
    %9 = vsyncpa %s8, 0
    loop: start=0, step=1, limit=6
    $region2: #{tpu_custom_call.1} parent=1 // loop_pre_header
      _
    $region3: #{tpu_custom_call.1} parent=1 // loop_header
      %s11 = sphi 0, %s15
      %p12 = scmp.ge.s32.totalorder %s11, 6
      %s21 = sphi 0, %s23
      %s24 = sphi 0, %s21
      %s25 = sphi 0, %s24
      %s41 = sphi 0, %s25
      %s47 = sphi 0, %s49
      %s50 = sphi 0, %s47
      %s51 = sphi 0, %s50
      %s67 = sphi 0, %s51
      %s73 = sphi 0, %s75
      %s76 = sphi 0, %s73
      %s77 = sphi 0, %s76
      %s93 = sphi 0, %s77
    $region4: #{tpu_custom_call.1} parent=1 // loop_header_branch
      %14 = sbr.rel (%p12) target = $region8
    $region5: #{tpu_custom_call.1} parent=1 // loop_body
      %s16 = ssub.s32 %s11, 1
      %s17 = ssub.s32 %s11, 2
      %s18 = sadd.s32 %s11, 1
      %s19 = ssub.s32 %s11, %s18
      %p20 = scmp.eq.s32.totalorder %s19, 0
      %s22 = sadd.s32 %s21, 1
      %s23 = scalar_select %p20, %s21, %s22
      %p26 = pneg %p20
      %p27 = scmp.eq.s32.totalorder %s11, 3
      %p28 = por %p26, %p27
      %p29 = scmp.ne.s32.totalorder %s21, %s24
      %p30 = scmp.eq.s32.totalorder %s11, 0
      %p31 = por %p29, %p30
      %p32 = scmp.ne.s32.totalorder %s21, %s24
      %p33 = scmp.eq.s32.totalorder %s16, 3
      %p34 = por %p32, %p33
      %p35 = scmp.ne.s32.totalorder %s24, %s25
      %p36 = scmp.eq.s32.totalorder %s16, 0
      %p37 = por %p35, %p36
      %p38 = scmp.ne.s32.totalorder %s24, %s25
      %p39 = scmp.eq.s32.totalorder %s17, 3
      %p40 = por %p38, %p39
      %p42 = scmp.ne.s32.totalorder %s25, %s41
      %p43 = scmp.eq.s32.totalorder %s17, 0
      %p44 = por %p42, %p43
      %s45 = ssub.s32 %s11, %s18
      %p46 = scmp.eq.s32.totalorder %s45, 0
      %s48 = sadd.s32 %s47, 1
      %s49 = scalar_select %p46, %s47, %s48
      %p52 = pneg %p46
      %p53 = scmp.eq.s32.totalorder %s11, 3
      %p54 = por %p52, %p53
      %p55 = scmp.ne.s32.totalorder %s47, %s50
      %p56 = scmp.eq.s32.totalorder %s11, 0
      %p57 = por %p55, %p56
      %p58 = scmp.ne.s32.totalorder %s47, %s50
      %p59 = scmp.eq.s32.totalorder %s16, 3
      %p60 = por %p58, %p59
      %p61 = scmp.ne.s32.totalorder %s50, %s51
      %p62 = scmp.eq.s32.totalorder %s16, 0
      %p63 = por %p61, %p62
      %p64 = scmp.ne.s32.totalorder %s50, %s51
      %p65 = scmp.eq.s32.totalorder %s17, 3
      %p66 = por %p64, %p65
      %p68 = scmp.ne.s32.totalorder %s51, %s67
      %p69 = scmp.eq.s32.totalorder %s17, 0
      %p70 = por %p68, %p69
      %s71 = ssub.s32 %s11, %s18
      %p72 = scmp.eq.s32.totalorder %s71, 0
      %s74 = sadd.s32 %s73, 1
      %s75 = scalar_select %p72, %s73, %s74
      %p78 = pneg %p72
      %p79 = scmp.eq.s32.totalorder %s11, 3
      %p80 = por %p78, %p79
      %p81 = scmp.ne.s32.totalorder %s73, %s76
      %p82 = scmp.eq.s32.totalorder %s11, 0
      %p83 = por %p81, %p82
      %p84 = scmp.ne.s32.totalorder %s73, %s76
      %p85 = scmp.eq.s32.totalorder %s16, 3
      %p86 = por %p84, %p85
      %p87 = scmp.ne.s32.totalorder %s76, %s77
      %p88 = scmp.eq.s32.totalorder %s16, 0
      %p89 = por %p87, %p88
      %p90 = scmp.ne.s32.totalorder %s76, %s77
      %p91 = scmp.eq.s32.totalorder %s17, 3
      %p92 = por %p90, %p91
      %p94 = scmp.ne.s32.totalorder %s77, %s93
      %p95 = scmp.eq.s32.totalorder %s17, 0
      %p96 = por %p94, %p95
      %p97 = scmp.le.s32.totalorder 1, %s11
      %p98 = scmp.lt.s32.totalorder %s11, 5
      %p99 = pnand %p97, %p98
      %p100 = pneg %p99
      // Predicated region
      $region9: #{tpu_custom_call.1} parent=5 // pred_check
        _
      $region10: #{tpu_custom_call.1} parent=5 // pred_check_branch
        %102 = sbr.rel (%p99) target = $region12
      $region11: #{tpu_custom_call.1} parent=5 // pred_region
        %s103 = ssub.s32 %s11, 1
      $region12: #{tpu_custom_call.1} parent=5 // pred_fallthru
        _
      %p104 = scmp.lt.s32.totalorder %s11, 4
      // Predicated region
      $region13: #{tpu_custom_call.1} parent=5 // pred_check
        %p105 = pneg %p104
      $region14: #{tpu_custom_call.1} parent=5 // pred_check_branch
        %107 = sbr.rel (%p105) target = $region16
      $region15: #{tpu_custom_call.1} parent=5 // pred_region
        // Predicated region
        $region17: #{tpu_custom_call.1} parent=15 // pred_check
          %p108 = pneg %p31
        $region18: #{tpu_custom_call.1} parent=15 // pred_check_branch
          %110 = sbr.rel (%p108) target = $region20
        $region19: #{tpu_custom_call.1} parent=15 // pred_region
          %p111 = scmp.lt.s32.totalorder %s11, 3
          %s112 = scalar_select %p111, %s11, 3
          %s113 = smul.addr %s112, 8
          %s114 = scalar_lea.vmem %s0, %s113
        $region20: #{tpu_custom_call.1} parent=15 // pred_fallthru
          _
        // Predicated region
        $region21: #{tpu_custom_call.1} parent=15 // pred_check
          %p115 = pneg %p57
        $region22: #{tpu_custom_call.1} parent=15 // pred_check_branch
          %117 = sbr.rel (%p115) target = $region24
        $region23: #{tpu_custom_call.1} parent=15 // pred_region
          %p118 = scmp.lt.s32.totalorder %s11, 3
          %s119 = scalar_select %p118, %s11, 3
          %s120 = smul.addr %s119, 8
          %s121 = scalar_lea.vmem %s1, %s120
        $region24: #{tpu_custom_call.1} parent=15 // pred_fallthru
          _
      $region16: #{tpu_custom_call.1} parent=5 // pred_fallthru
        _
      %p122 = scmp.le.s32.totalorder 1, %s11
      %p123 = scmp.lt.s32.totalorder %s11, 5
      %p124 = pnand %p122, %p123
      %p125 = pneg %p124
      // Predicated region
      $region25: #{tpu_custom_call.1} parent=5 // pred_check
        _
      $region26: #{tpu_custom_call.1} parent=5 // pred_check_branch
        %127 = sbr.rel (%p124) target = $region28
      $region27: #{tpu_custom_call.1} parent=5 // pred_region
        %s128 = ssub.s32 %s11, 1
        %p129 = scmp.lt.s32.totalorder %s16, 3
        %s130 = scalar_select %p129, %s16, 3
        %s131 = smul.addr %s130, 8
        %s132 = scalar_lea.vmem %s0, %s131
        %p133 = pneg %p37
        %p134 = pneg %p34
        %p135 = scmp.lt.s32.totalorder %s16, 3
        %s136 = scalar_select %p135, %s16, 3
        %s137 = smul.addr %s136, 8
        %s138 = scalar_lea.vmem %s1, %s137
        %p139 = pneg %p63
        %p140 = pneg %p60
        %p141 = pneg %p89
        %p142 = pneg %p86
        %s143 = sand.u32 %s76, 1
        %s144 = scalar_lea.sflag [#allocation3], %s143
        %s145 = sand.u32 %s76, 1
        %s146 = scalar_lea.vmem [#allocation2], %s145
        %p147 = scmp.lt.s32.totalorder %s16, 3
        %s148 = scalar_select %p147, %s16, 3
        %s149 = smul.addr %s148, 8
        %s150 = scalar_lea.vmem %s0, %s149
        %p151 = scmp.lt.s32.totalorder %s16, 3
        %s152 = scalar_select %p151, %s16, 3
        %s153 = smul.addr %s152, 8
        %s154 = scalar_lea.vmem %s1, %s153
        %v155 = vld [vmem:[%s150] sm:$0xff]
        %v156 = vld [vmem:[%s154] sm:$0xff]
        %vm158 = vcmask 261120
        %v159 = vsel %vm158, %v155, -inf
        %160 = vmax.xlane.f32.xlu0 %v159
        %v161 = vpop.xlane.xlu0 %160
        %v162 = vsub.f32 %v155, %v161
        %v163 = vmul.f32 %v162, 1.442695
        %v164 = vpow.pop %v163
        %v165 = vsel %vm158, %v164, 0.0
        %166 = vadd.xlane.f32.xlu0 %v165
        %v167 = vpop.xlane.xlu0 %166
        %v168 = vlog2.pop %v167
        %v169 = vmul.f32 %v168, 0.6931472
        %v170 = vadd.f32 %v161, %v169
        %v171 = vlaneseq
        %v172 = vand.u32 %v171, 127
        %173 = vset.pattern.permute.xlu0 0
        %174 = vperm.xlu0 %173, %v156
        %v175 = vpop.permute.xlu0 %174
        %vm176 = vcmp.eq.s32.totalorder %v172, %v175
        %v177 = vsel %vm176, %v155, 0.0
        %v178 = vsel %vm158, %v177, 0.0
        %179 = vadd.xlane.f32.xlu0 %v178
        %v180 = vpop.xlane.xlu0 %179
        %v181 = vsub.f32 %v180, %v170
        %v182 = vsub.f32 0.0, %v156
        %v183 = vmul.f32 %v182, %v181
        %v184 = vsub.f32 0.0, %v183
        %v185 = vmul.f32 %v184, 1.442695
        %v186 = vpow.pop %v185
        %v187 = vsub.f32 1.0, %v186
        %v188 = vmul.f32 %v187, %v187
        %v189 = vmul.f32 %v188, %v183
        %s190 = smul.u32 %s16, 8
        %v191 = vlaneseq
        %v192 = vshrl.u32 %v191, 7
        %v193 = vstv %s190
        %v194 = vadd.s32 %v193, %v192
        %vm195 = vcmp.lt.s32.totalorder %v194, 29
        %v196 = vsel %vm195, %v189, 0.0
        %198 = vrot.lane.b32.xlu0 %v196, 127
        %v199 = vpop.permute.xlu0 %198
        %vm201 = vcmask 7168
        %v202 = vsel %vm201, %v199, 0.0
        %203 = vadd.xlane.f32.xlu0 %v202
        %v204 = vpop.xlane.xlu0 %203
        %v205 = vrot.slane %v204, 4
        %v206 = vadd.f32 %v204, %v205
        %v207 = vrot.slane %v206, 2
        %v208 = vadd.f32 %v206, %v207
        %v209 = vrot.slane %v208, 1
        %v210 = vadd.f32 %v208, %v209
        %s211 = vtos %v210
        %v212 = vstv %s211
        %213 = vst [vmem:[%s146] sm:$0x1] %v212
        %s214 = sand.u32 %s76, 1
        %s215 = scalar_lea.sflag [#allocation3], %s214
        %s216 = sand.u32 %s76, 1
        %s217 = scalar_lea.vmem [#allocation2], %s216
        // Predicated region
        $region29: #{tpu_custom_call.1} parent=27 // pred_check
          %p218 = pneg %p86
        $region30: #{tpu_custom_call.1} parent=27 // pred_check_branch
          %220 = sbr.rel (%p218) target = $region32
        $region31: #{tpu_custom_call.1} parent=27 // pred_region
          %s222 = ssub.s32 16, 16
          %223 = vsyncadd %s215, %s222
          %s224 = smul.addr %s16, 16
          %s225 = scalar_lea.hbm %s2, %s224
          %s227 = sshll.u32 %s217, 4
          %s228 = int_to_ptr.vmem [resolvable:$true] %s227
          %230 = dma.vmem_to_hbm [thread:$0]  %s228, 16, %s225, %s215
        $region32: #{tpu_custom_call.1} parent=27 // pred_fallthru
          _
      $region28: #{tpu_custom_call.1} parent=5 // pred_fallthru
        _
      %p231 = scmp.le.s32.totalorder 2, %s11
      // Predicated region
      $region33: #{tpu_custom_call.1} parent=5 // pred_check
        %p232 = pneg %p231
      $region34: #{tpu_custom_call.1} parent=5 // pred_check_branch
        %234 = sbr.rel (%p232) target = $region36
      $region35: #{tpu_custom_call.1} parent=5 // pred_region
        %s235 = ssub.s32 %s11, 2
        // Predicated region
        $region37: #{tpu_custom_call.1} parent=35 // pred_check
          %p236 = pneg %p92
        $region38: #{tpu_custom_call.1} parent=35 // pred_check_branch
          %238 = sbr.rel (%p236) target = $region40
        $region39: #{tpu_custom_call.1} parent=35 // pred_region
          %s239 = sand.u32 %s77, 1
          %s240 = scalar_lea.sflag [#allocation3], %s239
          %s241 = sand.u32 %s77, 1
          %s242 = scalar_lea.vmem [#allocation2], %s241
          %243 = dma.done %s240, 16
        $region40: #{tpu_custom_call.1} parent=35 // pred_fallthru
          _
      $region36: #{tpu_custom_call.1} parent=5 // pred_fallthru
        _
    $region6: #{tpu_custom_call.1} parent=1 // loop_footer
      %s15 = sadd.s32 1, %s11
    $region7: #{tpu_custom_call.1} parent=1 // loop_footer_branch
      %10 = sbr.rel target = $region3
    $region8: #{tpu_custom_call.1} parent=1 // loop_exit
      _
    %244 = vsyncpa [#allocation3], 1
    %s245 = scalar_lea.sflag [#allocation3], 1
    %246 = vsyncpa %s245, 1

</llo_original>
